<compile_context>
chip_gen: v5e
topology: v5e:2x2
jax: 0.10.0
libtpu: 0.0.40
codegen_flags: <defaults>
</compile_context>

<pallas_src>
import jax
import jax.numpy as jnp
from jax.experimental import pallas as pl
from jax.experimental.pallas import tpu as pltpu


# -------- fixed architecture hyperparameters (stand-ins for the optuna trial) ------
IN_FEATURES_FFNN = 32
FFNN_HIDDEN = 64
FFNN_OUT = 32                    # FFNN_pre.output_size

CNN_CHANNELS = 4                 # one-hot DNA channels
CNN_LEN = 16
CONV_OUT_CH = 8
CONV_K = 5
CONV_PAD = 2
CONV_LOUT = CNN_LEN              # stride 1, "same" padding
POOL_LOUT = CONV_LOUT // 2
CNN_OUT = CONV_OUT_CH * POOL_LOUT    # CNN_pre.output_size = 64

POST1 = 512
POST2 = 128
N_CLASSES = 2
N_OUT_PAD = 128                  # lane-dense output slab (sliced to n_classes outside)

X_LANES = 128                    # input slab: [xf(32) | xc(64) | pad(32)]

# ---- packed-weight slab (all 128-row weights, concatenated along lanes) ----
WA_W, WB_W, W1_W, W3_W = 256, 128, POST1, N_OUT_PAD
WA_OFF = 0
WB_OFF = WA_OFF + WA_W           # 256
W1_OFF = WB_OFF + WB_W           # 384
W3_OFF = W1_OFF + W1_W           # 896
W_SLAB = W3_OFF + W3_W           # 1024

# ---- packed-bias slab offsets ----
BA_OFF = 0
BB_OFF = BA_OFF + WA_W           # 256
B1_OFF = BB_OFF + WB_W           # 384
B2_OFF = B1_OFF + W1_W           # 896
B3_OFF = B2_OFF + POST2          # 1024
BIAS_SLAB = B3_OFF + N_OUT_PAD   # 1152

HIGH = jax.lax.Precision.HIGHEST


def _round_up(x, m):
    return ((x + m - 1) // m) * m


# --------------------------------- fused kernel -------------------------------------

def _fused_forward_kernel(x_ref, w128_ref, w2_ref, bias_ref, o_ref):
    f32, bf16 = jnp.float32, jnp.bfloat16

    # static, 128-lane-aligned carves of the packed slabs
    wA = w128_ref[:, WA_OFF:WA_OFF + WA_W]
    wB = w128_ref[:, WB_OFF:WB_OFF + WB_W]
    w1 = w128_ref[:, W1_OFF:W1_OFF + W1_W]
    w3 = w128_ref[:, W3_OFF:W3_OFF + W3_W]
    bA = bias_ref[:, BA_OFF:BA_OFF + WA_W]
    bB = bias_ref[:, BB_OFF:BB_OFF + WB_W]
    b1 = bias_ref[:, B1_OFF:B1_OFF + W1_W]
    b2 = bias_ref[:, B2_OFF:B2_OFF + POST2]
    b3 = bias_ref[:, B3_OFF:B3_OFF + N_OUT_PAD]

    # Stage A: FFNN layer-1 + Conv1d(even) + Conv1d(odd) in ONE MXU push.
    # Output columns are [h1 | conv_even | h1 | conv_odd]; after ReLU a single
    # lane-half max realizes both MaxPool1d(2) and a pass-through of relu(h1).
    # (nn.Dropout is identity at inference.)
    y = jnp.dot(x_ref[...], wA, preferred_element_type=f32) + bA
    y = jnp.maximum(y, 0.0)                              # (M, 256)
    z = jnp.maximum(y[:, 0:128], y[:, 128:256])          # (M, 128): [relu(h1) | c]

    # Stage B: FFNN layer-2 fused with torch.cat — wB carries c through an identity
    # block, so zz = [relu(h1@wf2+bf2) | c | 0] is already the packed input of the
    # first post layer (c >= 0, so the ReLU is a no-op on it).
    zz = jnp.dot(z.astype(bf16), wB, preferred_element_type=f32) + bB
    zz = jnp.maximum(zz, 0.0)                            # (M, 128)

    # post layer 1 (concat folded into a packed K=128 weight)
    p = jnp.dot(zz.astype(bf16), w1, preferred_element_type=f32) + b1
    p = jnp.maximum(p, 0.0)                              # (M, 512)

    # post layer 2
    p = jnp.dot(p.astype(bf16), w2_ref[...], preferred_element_type=f32) + b2
    p = jnp.maximum(p, 0.0)                              # (M, 128)

    # final Linear (lane-padded to 128; valid cols are [:n_classes])
    o_ref[...] = jnp.dot(p.astype(bf16), w3, preferred_element_type=f32) + b3


def fused_forward(fused_params, x_ffnn, x_cnn):
    w128, w2, biases = fused_params
    B = x_ffnn.shape[0]
    x_cat = jnp.concatenate([x_ffnn, x_cnn.reshape(B, -1)], axis=1)   # (B, 96)

    # Row tiling: whole (16-padded) batch when small; otherwise 256-row tiles
    # (multiple of 128 for v5e's MXU, 256 for v6e/v7x). Weights are DMA'd once.
    if B <= 256:
        b_pad = _round_up(max(B, 16), 16)
        m_tile = b_pad
    else:
        m_tile = 256
        b_pad = _round_up(B, m_tile)

    x_slab = jnp.pad(
        x_cat, ((0, b_pad - B), (0, X_LANES - x_cat.shape[1]))
    ).astype(jnp.bfloat16)

    out = pl.pallas_call(
        _fused_forward_kernel,
        out_shape=jax.ShapeDtypeStruct((b_pad, N_OUT_PAD), jnp.float32),
        grid_spec=pltpu.PrefetchScalarGridSpec(
            num_scalar_prefetch=0,
            grid=(b_pad // m_tile,),
            in_specs=[
                pl.BlockSpec((m_tile, X_LANES), lambda i: (i, 0)),
                pl.BlockSpec((X_LANES, W_SLAB), lambda i: (0, 0)),   # weight slab, resident
                pl.BlockSpec((POST1, POST2), lambda i: (0, 0)),      # post layer-2 weight
                pl.BlockSpec((1, BIAS_SLAB), lambda i: (0, 0)),      # bias slab
            ],
            out_specs=pl.BlockSpec((m_tile, N_OUT_PAD), lambda i: (i, 0)),
        ),
        compiler_params=pltpu.CompilerParams(
            dimension_semantics=("parallel",)),
    )(x_slab, w128, w2, biases)
    return out[:B, :N_CLASSES]


# ------------------------------ parameter handling ----------------------------------

def init_linear(key, fan_in, fan_out):
    kw, kb = jax.random.split(key)
    bound = 1.0 / float(fan_in) ** 0.5
    w = jax.random.uniform(kw, (fan_in, fan_out), jnp.float32, -bound, bound)
    b = jax.random.uniform(kb, (fan_out,), jnp.float32, -bound, bound)
    return w, b


def init_conv1d(key, cin, cout, k):
    kw, kb = jax.random.split(key)
    bound = 1.0 / float(cin * k) ** 0.5
    w = jax.random.uniform(kw, (cout, cin, k), jnp.float32, -bound, bound)
    b = jax.random.uniform(kb, (cout,), jnp.float32, -bound, bound)
    return w, b


def build_params(key):
    ks = jax.random.split(key, 6)
    ffnn = [init_linear(ks[0], IN_FEATURES_FFNN, FFNN_HIDDEN),
            init_linear(ks[1], FFNN_HIDDEN, FFNN_OUT)]
    conv = init_conv1d(ks[2], CNN_CHANNELS, CONV_OUT_CH, CONV_K)
    post_hidden = [init_linear(ks[3], FFNN_OUT + CNN_OUT, POST1),
                   init_linear(ks[4], POST1, POST2)]
    post_out = init_linear(ks[5], POST2, N_CLASSES)
    return {"ffnn": ffnn, "conv": conv,
            "post_hidden": post_hidden, "post_out": post_out}


def prepare_fused_params(params):
    """One-time weight preprocessing: Toeplitz conv matrices, duplicated-half stage-A
    weight, identity-carry stage-B weight, concat-folded post layer 1, lane padding of
    the final layer, then bf16 cast + packing into 3 operands (2 weight slabs + biases)."""
    f32 = jnp.float32
    (wf1, bf1), (wf2, bf2) = params["ffnn"]
    w_conv, b_conv = params["conv"]                    # (Cout, Cin, K), (Cout,)
    (wp1, bp1), (wp2, bp2) = params["post_hidden"]
    wp3, bp3 = params["post_out"]

    # Conv1d (stride 1, zero pad) as a banded matrix over the flattened (Cin*L) input:
    #   W[ci*L + j, co*Lout + l] = w_conv[co, ci, j - l + pad]  if 0 <= j-l+pad < K else 0
    j = jnp.arange(CNN_LEN)[:, None]
    l = jnp.arange(CONV_LOUT)[None, :]
    k_idx = j - l + CONV_PAD
    valid = (k_idx >= 0) & (k_idx < CONV_K)
    k_safe = jnp.clip(k_idx, 0, CONV_K - 1)
    wt = jnp.where(valid[None, None], w_conv[:, :, k_safe], 0.0)     # (Cout,Cin,L,Lout)
    wt = jnp.transpose(wt, (1, 2, 0, 3)).reshape(CNN_CHANNELS * CNN_LEN,
                                                 CONV_OUT_CH, CONV_LOUT)
    w_even = wt[:, :, 0::2].reshape(CNN_CHANNELS * CNN_LEN, CNN_OUT)
    w_odd = wt[:, :, 1::2].reshape(CNN_CHANNELS * CNN_LEN, CNN_OUT)
    b_conv_rep = jnp.repeat(b_conv, POOL_LOUT)                       # channel-major (64,)

    # Stage A weight (128, 256): cols [wf1 | w_even | wf1 | w_odd] over rows [xf | xc | 0]
    wA = jnp.zeros((X_LANES, WA_W), f32)
    wA = wA.at[0:IN_FEATURES_FFNN, 0:FFNN_HIDDEN].set(wf1)
    wA = wA.at[IN_FEATURES_FFNN:IN_FEATURES_FFNN + CNN_CHANNELS * CNN_LEN,
               FFNN_HIDDEN:128].set(w_even)
    wA = wA.at[0:IN_FEATURES_FFNN, 128:128 + FFNN_HIDDEN].set(wf1)
    wA = wA.at[IN_FEATURES_FFNN:IN_FEATURES_FFNN + CNN_CHANNELS * CNN_LEN,
               128 + FFNN_HIDDEN:256].set(w_odd)
    bA = jnp.zeros((WA_W,), f32)
    bA = bA.at[0:FFNN_HIDDEN].set(bf1).at[FFNN_HIDDEN:128].set(b_conv_rep)
    bA = bA.at[128:128 + FFNN_HIDDEN].set(bf1).at[128 + FFNN_HIDDEN:256].set(b_conv_rep)

    # Stage B weight (128, 128): FFNN layer-2 in cols [0:32], identity carry of the
    # CNN features in cols [32:96]  ->  zz = [h | c | 0] (packed post-layer-1 input).
    wB = jnp.zeros((X_LANES, WB_W), f32)
    wB = wB.at[0:FFNN_HIDDEN, 0:FFNN_OUT].set(wf2)
    wB = wB.at[FFNN_HIDDEN:128, FFNN_OUT:FFNN_OUT + CNN_OUT].set(
        jnp.eye(CNN_OUT, dtype=f32))
    bB = jnp.zeros((WB_W,), f32).at[0:FFNN_OUT].set(bf2)

    # post layer 1: torch.cat((x_FFNN, x_CNN), dim=1) folded into one K=128 weight
    w1 = jnp.zeros((X_LANES, POST1), f32)
    w1 = w1.at[0:FFNN_OUT].set(wp1[:FFNN_OUT])
    w1 = w1.at[FFNN_OUT:FFNN_OUT + CNN_OUT].set(wp1[FFNN_OUT:])

    # final layer padded to a lane-dense 128-wide output
    w3 = jnp.zeros((POST2, N_OUT_PAD), f32).at[:, :N_CLASSES].set(wp3)
    b3 = jnp.zeros((N_OUT_PAD,), f32).at[:N_CLASSES].set(bp3)

    w128 = jnp.concatenate([wA, wB, w1, w3], axis=1).astype(jnp.bfloat16)  # (128, 1024)
    w2 = wp2.astype(jnp.bfloat16)                                          # (512, 128)
    biases = jnp.concatenate([bA, bB, bp1, bp2, b3]).reshape(1, BIAS_SLAB) # (1, 1152) f32
    return (w128, w2, biases)


# --------------------------- pure-JAX reference (for checking) ----------------------

def reference_forward(params, x_ffnn, x_cnn):
    relu = lambda v: jnp.maximum(v, 0.0)
    (wf1, bf1), (wf2, bf2) = params["ffnn"]
    w_conv, b_conv = params["conv"]
    (wp1, bp1), (wp2, bp2) = params["post_hidden"]
    wp3, bp3 = params["post_out"]

    h = relu(jnp.dot(x_ffnn, wf1, precision=HIGH) + bf1)
    h = relu(jnp.dot(h, wf2, precision=HIGH) + bf2)

    B = x_cnn.shape[0]
    xp = jnp.pad(x_cnn, ((0, 0), (0, 0), (CONV_PAD, CONV_PAD)))
    y = jnp.zeros((B, CONV_OUT_CH, CONV_LOUT), jnp.float32) + b_conv[None, :, None]
    for k in range(CONV_K):
        y = y + jnp.einsum('bcl,oc->bol', xp[:, :, k:k + CONV_LOUT], w_conv[:, :, k],
                           precision=HIGH)
    y = relu(y)
    y = jnp.max(y.reshape(B, CONV_OUT_CH, POOL_LOUT, 2), axis=-1)
    c = y.reshape(B, -1)

    o = jnp.concatenate([h, c], axis=1)
    o = relu(jnp.dot(o, wp1, precision=HIGH) + bp1)
    o = relu(jnp.dot(o, wp2, precision=HIGH) + bp2)
    return jnp.dot(o, wp3, precision=HIGH) + bp3


# -------------------------------------- main ----------------------------------------

if __name__ == "__main__":
    B = 2
    key = jax.random.PRNGKey(0)
    k_par, k_xf, k_xc = jax.random.split(key, 3)

    params = build_params(k_par)
    x_ffnn = jax.random.normal(k_xf, (B, IN_FEATURES_FFNN), jnp.float32)
    x_cnn = jax.random.normal(k_xc, (B, CNN_CHANNELS, CNN_LEN), jnp.float32)

    fused_params = prepare_fused_params(params)        # one-time weight preprocessing
    fwd = jax.jit(fused_forward)

    out = jax.block_until_ready(fwd(fused_params, x_ffnn, x_cnn))
    assert out.shape == (B, N_CLASSES), out.shape

    ref = jax.block_until_ready(reference_forward(params, x_ffnn, x_cnn))
    # bf16 matmuls with f32 accumulation vs the f32/HIGHEST reference
    assert jnp.allclose(out, ref, rtol=2e-2, atol=2e-2), (out, ref)

    print("KERNEL_OK")
</pallas_src>

<mosaic_0001>
module attributes {stable_mosaic.version = 11 : i64} {
  func.func @_fused_forward_kernel(%arg0: i32, %arg1: memref<16x128xbf16, #tpu.memory_space<vmem>>, %arg2: memref<128x1024xbf16, #tpu.memory_space<vmem>>, %arg3: memref<512x128xbf16, #tpu.memory_space<vmem>>, %arg4: memref<1x1152xf32, #tpu.memory_space<vmem>>, %arg5: memref<16x128xf32, #tpu.memory_space<vmem>>) attributes {dimension_semantics = [#tpu.dimension_semantics<parallel>], iteration_bounds = array<i64: 1>, scalar_prefetch = 0 : i64, scratch_operands = 0 : i64, tpu.core_type = #tpu.core_type<tc>, window_params = [{transform_indices = @transform_0, window_bounds = array<i64: 16, 128>}, {pipeline_mode = #tpu.pipeline_mode<synchronous>, transform_indices = @transform_1, window_bounds = array<i64: 128, 1024>}, {pipeline_mode = #tpu.pipeline_mode<synchronous>, transform_indices = @transform_2, window_bounds = array<i64: 512, 128>}, {pipeline_mode = #tpu.pipeline_mode<synchronous>, transform_indices = @transform_3, window_bounds = array<i64: 1, 1152>}, {transform_indices = @transform_4, window_bounds = array<i64: 16, 128>}]} {
    %c0 = arith.constant 0 : index
    %c0_0 = arith.constant 0 : index
    %0 = vector.load %arg2[%c0, %c0_0] : memref<128x1024xbf16, #tpu.memory_space<vmem>>, vector<128x256xbf16>
    %c0_1 = arith.constant 0 : index
    %c256 = arith.constant 256 : index
    %1 = vector.load %arg2[%c0_1, %c256] : memref<128x1024xbf16, #tpu.memory_space<vmem>>, vector<128x128xbf16>
    %c0_2 = arith.constant 0 : index
    %c384 = arith.constant 384 : index
    %2 = vector.load %arg2[%c0_2, %c384] : memref<128x1024xbf16, #tpu.memory_space<vmem>>, vector<128x512xbf16>
    %c0_3 = arith.constant 0 : index
    %c896 = arith.constant 896 : index
    %3 = vector.load %arg2[%c0_3, %c896] : memref<128x1024xbf16, #tpu.memory_space<vmem>>, vector<128x128xbf16>
    %c0_4 = arith.constant 0 : index
    %c0_5 = arith.constant 0 : index
    %4 = vector.load %arg4[%c0_4, %c0_5] : memref<1x1152xf32, #tpu.memory_space<vmem>>, vector<1x256xf32>
    %c0_6 = arith.constant 0 : index
    %c256_7 = arith.constant 256 : index
    %5 = vector.load %arg4[%c0_6, %c256_7] : memref<1x1152xf32, #tpu.memory_space<vmem>>, vector<1x128xf32>
    %c0_8 = arith.constant 0 : index
    %c384_9 = arith.constant 384 : index
    %6 = vector.load %arg4[%c0_8, %c384_9] : memref<1x1152xf32, #tpu.memory_space<vmem>>, vector<1x512xf32>
    %c0_10 = arith.constant 0 : index
    %c896_11 = arith.constant 896 : index
    %7 = vector.load %arg4[%c0_10, %c896_11] : memref<1x1152xf32, #tpu.memory_space<vmem>>, vector<1x128xf32>
    %c0_12 = arith.constant 0 : index
    %c1024 = arith.constant 1024 : index
    %8 = vector.load %arg4[%c0_12, %c1024] : memref<1x1152xf32, #tpu.memory_space<vmem>>, vector<1x128xf32>
    %c0_13 = arith.constant 0 : index
    %c0_14 = arith.constant 0 : index
    %9 = vector.load %arg1[%c0_13, %c0_14] : memref<16x128xbf16, #tpu.memory_space<vmem>>, vector<16x128xbf16>
    %cst = arith.constant dense<0.000000e+00> : vector<16x256xf32>
    %10 = tpu.matmul %9, %0, %cst {dimension_numbers = #tpu.dot_dimension_numbers<[1], [0], [0], [1], [0, 0, 1, 1], [], []>} : vector<16x128xbf16>, vector<128x256xbf16>, vector<16x256xf32> -> vector<16x256xf32>
    %11 = vector.broadcast %4 : vector<1x256xf32> to vector<16x256xf32>
    %12 = arith.addf %10, %11 : vector<16x256xf32>
    %cst_15 = arith.constant 0.000000e+00 : f32
    %13 = vector.broadcast %cst_15 : f32 to vector<16x256xf32>
    %14 = arith.maximumf %12, %13 : vector<16x256xf32>
    %15 = vector.extract_strided_slice %14 {offsets = [0, 0], sizes = [16, 128], strides = [1, 1]} : vector<16x256xf32> to vector<16x128xf32>
    %16 = vector.extract_strided_slice %14 {offsets = [0, 128], sizes = [16, 128], strides = [1, 1]} : vector<16x256xf32> to vector<16x128xf32>
    %17 = arith.maximumf %15, %16 : vector<16x128xf32>
    %18 = arith.truncf %17 : vector<16x128xf32> to vector<16x128xbf16>
    %cst_16 = arith.constant dense<0.000000e+00> : vector<16x128xf32>
    %19 = tpu.matmul %18, %1, %cst_16 {dimension_numbers = #tpu.dot_dimension_numbers<[1], [0], [0], [1], [0, 0, 1, 1], [], []>} : vector<16x128xbf16>, vector<128x128xbf16>, vector<16x128xf32> -> vector<16x128xf32>
    %20 = vector.broadcast %5 : vector<1x128xf32> to vector<16x128xf32>
    %21 = arith.addf %19, %20 : vector<16x128xf32>
    %cst_17 = arith.constant 0.000000e+00 : f32
    %22 = vector.broadcast %cst_17 : f32 to vector<16x128xf32>
    %23 = arith.maximumf %21, %22 : vector<16x128xf32>
    %24 = arith.truncf %23 : vector<16x128xf32> to vector<16x128xbf16>
    %cst_18 = arith.constant dense<0.000000e+00> : vector<16x512xf32>
    %25 = tpu.matmul %24, %2, %cst_18 {dimension_numbers = #tpu.dot_dimension_numbers<[1], [0], [0], [1], [0, 0, 1, 1], [], []>} : vector<16x128xbf16>, vector<128x512xbf16>, vector<16x512xf32> -> vector<16x512xf32>
    %26 = vector.broadcast %6 : vector<1x512xf32> to vector<16x512xf32>
    %27 = arith.addf %25, %26 : vector<16x512xf32>
    %cst_19 = arith.constant 0.000000e+00 : f32
    %28 = vector.broadcast %cst_19 : f32 to vector<16x512xf32>
    %29 = arith.maximumf %27, %28 : vector<16x512xf32>
    %30 = arith.truncf %29 : vector<16x512xf32> to vector<16x512xbf16>
    %c0_20 = arith.constant 0 : index
    %c0_21 = arith.constant 0 : index
    %31 = vector.load %arg3[%c0_20, %c0_21] : memref<512x128xbf16, #tpu.memory_space<vmem>>, vector<512x128xbf16>
    %cst_22 = arith.constant dense<0.000000e+00> : vector<16x128xf32>
    %32 = tpu.matmul %30, %31, %cst_22 {dimension_numbers = #tpu.dot_dimension_numbers<[1], [0], [0], [1], [0, 0, 1, 1], [], []>} : vector<16x512xbf16>, vector<512x128xbf16>, vector<16x128xf32> -> vector<16x128xf32>
    %33 = vector.broadcast %7 : vector<1x128xf32> to vector<16x128xf32>
    %34 = arith.addf %32, %33 : vector<16x128xf32>
    %cst_23 = arith.constant 0.000000e+00 : f32
    %35 = vector.broadcast %cst_23 : f32 to vector<16x128xf32>
    %36 = arith.maximumf %34, %35 : vector<16x128xf32>
    %37 = arith.truncf %36 : vector<16x128xf32> to vector<16x128xbf16>
    %cst_24 = arith.constant dense<0.000000e+00> : vector<16x128xf32>
    %38 = tpu.matmul %37, %3, %cst_24 {dimension_numbers = #tpu.dot_dimension_numbers<[1], [0], [0], [1], [0, 0, 1, 1], [], []>} : vector<16x128xbf16>, vector<128x128xbf16>, vector<16x128xf32> -> vector<16x128xf32>
    %39 = vector.broadcast %8 : vector<1x128xf32> to vector<16x128xf32>
    %40 = arith.addf %38, %39 : vector<16x128xf32>
    %c0_25 = arith.constant 0 : index
    %c0_26 = arith.constant 0 : index
    %41 = vector.load %arg5[%c0_25, %c0_26] : memref<16x128xf32, #tpu.memory_space<vmem>>, vector<16x128xf32>
    tpu.vector_store %arg5[%c0_25, %c0_26], %40 {strides = array<i32>} : memref<16x128xf32, #tpu.memory_space<vmem>>, vector<16x128xf32>,
    return
  }
  func.func @transform_0(%arg0: i32) -> (i32, i32) {
    %c0_i32 = arith.constant 0 : i32
    %c0_i32_0 = arith.constant 0 : i32
    return %arg0, %c0_i32 : i32, i32
  }
  func.func @transform_1(%arg0: i32) -> (i32, i32) {
    %c0_i32 = arith.constant 0 : i32
    %c0_i32_0 = arith.constant 0 : i32
    %c0_i32_1 = arith.constant 0 : i32
    return %c0_i32, %c0_i32_0 : i32, i32
  }
  func.func @transform_2(%arg0: i32) -> (i32, i32) {
    %c0_i32 = arith.constant 0 : i32
    %c0_i32_0 = arith.constant 0 : i32
    %c0_i32_1 = arith.constant 0 : i32
    return %c0_i32, %c0_i32_0 : i32, i32
  }
  func.func @transform_3(%arg0: i32) -> (i32, i32) {
    %c0_i32 = arith.constant 0 : i32
    %c0_i32_0 = arith.constant 0 : i32
    %c0_i32_1 = arith.constant 0 : i32
    return %c0_i32, %c0_i32_0 : i32, i32
  }
  func.func @transform_4(%arg0: i32) -> (i32, i32) {
    %c0_i32 = arith.constant 0 : i32
    %c0_i32_0 = arith.constant 0 : i32
    return %arg0, %c0_i32 : i32, i32
  }
}

</mosaic_0001>

<llo_original>
// kernel: fused_forward.1
$region0: #{fused_forward.1}
  #allocation0 [shape = 'u32[]', space=smem, size = 0x4, offset = 0x4, fixed_abs, tag = 'smem constant byte address 0x4 - core index']
  #allocation1 [shape = 'u32[72,128]{1,0:T(1,128)}', space=vmem, size = 0x9000, scoped, tag = 'internal scratch']
  %s0 = inlined_call_operand.vmem [shape: bf16[16,128], index: 0, kind: input, shape index: {}]
  %s1 = inlined_call_operand.hbm [shape: bf16[128,1024], index: 1, kind: input, shape index: {}]
  %s2 = inlined_call_operand.hbm [shape: bf16[512,128], index: 2, kind: input, shape index: {}]
  %s3 = inlined_call_operand.vmem [shape: f32[1,1152], index: 3, kind: input, shape index: {}]
  %s4 = inlined_call_operand.vmem [shape: f32[16,128], index: 4, kind: output, shape index: {}]
  %s5 = sld [smem:[#allocation0]]
  $region34: #{fused_forward.1} parent=0
    _
  %s7 = ssub.s32 1, %s5
  %s8 = scalar_select 0, %s7, %s5
  $region1: #{fused_forward.1} parent=0
    #allocation2 [shape = 'u8[262144]{0}', space=vmem, size = 0x40000, scoped, tag = 'input window, operand 1, single buffered']
    #allocation3 [shape = 's32[1]{0}', space=sflag, size = 0x4, scoped, tag = 'scoped memory for fused_forward.1']
    #allocation4 [shape = 'u8[131072]{0}', space=vmem, size = 0x20000, scoped, tag = 'input window, operand 2, single buffered']
    #allocation5 [shape = 's32[1]{0}', space=sflag, size = 0x4, scoped, tag = 'scoped memory for fused_forward.1']
    %9 = vsyncpa [#allocation3], 0
    %10 = vsyncpa [#allocation5], 0
    // Predicated region
    $region2: #{fused_forward.1} parent=1 // pred_check
      _
    $region3: #{fused_forward.1} parent=1 // pred_check_branch
      %12 = sbr.rel (0) target = $region5
    $region4: #{fused_forward.1} parent=1 // pred_region
      _
    $region5: #{fused_forward.1} parent=1 // pred_fallthru
      _
    // Predicated region
    $region6: #{fused_forward.1} parent=1 // pred_check
      _
    $region7: #{fused_forward.1} parent=1 // pred_check_branch
      %14 = sbr.rel (0) target = $region9
    $region8: #{fused_forward.1} parent=1 // pred_region
      %16 = vsyncadd [#allocation3], 0
      %s17 = sshll.u32 %s1, 4
      %s18 = int_to_ptr.hbm [resolvable:$true] %s17
      %s19 = sshll.u32 [#allocation2], 4
      %s20 = int_to_ptr.vmem [resolvable:$true] %s19
      %25 = dma.hbm_to_vmem [thread:$0]  %s18, 8192, %s20, [#allocation3], 512, 512, 32
    $region9: #{fused_forward.1} parent=1 // pred_fallthru
      _
    // Predicated region
    $region10: #{fused_forward.1} parent=1 // pred_check
      _
    $region11: #{fused_forward.1} parent=1 // pred_check_branch
      %27 = sbr.rel (0) target = $region13
    $region12: #{fused_forward.1} parent=1 // pred_region
      %29 = vsyncadd [#allocation5], 0
      %s30 = sshll.u32 %s2, 4
      %s31 = int_to_ptr.hbm [resolvable:$true] %s30
      %s32 = sshll.u32 [#allocation4], 4
      %s33 = int_to_ptr.vmem [resolvable:$true] %s32
      %38 = dma.hbm_to_vmem [thread:$0]  %s31, 4096, %s33, [#allocation5], 64, 64, 4
    $region13: #{fused_forward.1} parent=1 // pred_fallthru
      _
    // Predicated region
    $region14: #{fused_forward.1} parent=1 // pred_check
      _
    $region15: #{fused_forward.1} parent=1 // pred_check_branch
      %40 = sbr.rel (0) target = $region17
    $region16: #{fused_forward.1} parent=1 // pred_region
      _
    $region17: #{fused_forward.1} parent=1 // pred_fallthru
      _
    // Predicated region
    $region18: #{fused_forward.1} parent=1 // pred_check
      _
    $region19: #{fused_forward.1} parent=1 // pred_check_branch
      %42 = sbr.rel (0) target = $region21
    $region20: #{fused_forward.1} parent=1 // pred_region
      %44 = dma.done [#allocation3], 8192
    $region21: #{fused_forward.1} parent=1 // pred_fallthru
      _
    // Predicated region
    $region22: #{fused_forward.1} parent=1 // pred_check
      _
    $region23: #{fused_forward.1} parent=1 // pred_check_branch
      %46 = sbr.rel (0) target = $region25
    $region24: #{fused_forward.1} parent=1 // pred_region
      %48 = dma.done [#allocation5], 4096
    $region25: #{fused_forward.1} parent=1 // pred_fallthru
      _
    %v49 = vld [vmem:[#allocation2] sm:$0xff]
    %v50 = vld [vmem:[#allocation2 + $0x20] sm:$0xff]
    %v51 = vld [vmem:[#allocation2 + $0x40] sm:$0xff]
    %v52 = vld [vmem:[#allocation2 + $0x60] sm:$0xff]
    %v53 = vld [vmem:[#allocation2 + $0x80] sm:$0xff]
    %v54 = vld [vmem:[#allocation2 + $0xa0] sm:$0xff]
    %v55 = vld [vmem:[#allocation2 + $0xc0] sm:$0xff]
    %v56 = vld [vmem:[#allocation2 + $0xe0] sm:$0xff]
    %v57 = vld [vmem:[#allocation2 + $0x100] sm:$0xff]
    %v58 = vld [vmem:[#allocation2 + $0x120] sm:$0xff]
    %v59 = vld [vmem:[#allocation2 + $0x140] sm:$0xff]
    %v60 = vld [vmem:[#allocation2 + $0x160] sm:$0xff]
    %v61 = vld [vmem:[#allocation2 + $0x180] sm:$0xff]
    %v62 = vld [vmem:[#allocation2 + $0x1a0] sm:$0xff]
    %v63 = vld [vmem:[#allocation2 + $0x1c0] sm:$0xff]
    %v64 = vld [vmem:[#allocation2 + $0x1e0] sm:$0xff]
    %v65 = vld [vmem:[#allocation2 + $0x8] sm:$0xf]
    %v66 = vld [vmem:[#allocation2 + $0x28] sm:$0xf]
    %v67 = vld [vmem:[#allocation2 + $0x48] sm:$0xf]
    %v68 = vld [vmem:[#allocation2 + $0x68] sm:$0xf]
    %v69 = vld [vmem:[#allocation2 + $0x88] sm:$0xf]
    %v70 = vld [vmem:[#allocation2 + $0xa8] sm:$0xf]
    %v71 = vld [vmem:[#allocation2 + $0xc8] sm:$0xf]
    %v72 = vld [vmem:[#allocation2 + $0xe8] sm:$0xf]
    %v73 = vld [vmem:[#allocation2 + $0x108] sm:$0xf]
    %v74 = vld [vmem:[#allocation2 + $0x128] sm:$0xf]
    %v75 = vld [vmem:[#allocation2 + $0x148] sm:$0xf]
    %v76 = vld [vmem:[#allocation2 + $0x168] sm:$0xf]
    %v77 = vld [vmem:[#allocation2 + $0x188] sm:$0xf]
    %v78 = vld [vmem:[#allocation2 + $0x1a8] sm:$0xf]
    %v79 = vld [vmem:[#allocation2 + $0x1c8] sm:$0xf]
    %v80 = vld [vmem:[#allocation2 + $0x1e8] sm:$0xf]
    %v81 = vld [vmem:[#allocation2 + $0xc] sm:$0xff]
    %v82 = vld [vmem:[#allocation2 + $0x14] sm:$0xff]
    %v83 = vld [vmem:[#allocation2 + $0x2c] sm:$0xff]
    %v84 = vld [vmem:[#allocation2 + $0x34] sm:$0xff]
    %v85 = vld [vmem:[#allocation2 + $0x4c] sm:$0xff]
    %v86 = vld [vmem:[#allocation2 + $0x54] sm:$0xff]
    %v87 = vld [vmem:[#allocation2 + $0x6c] sm:$0xff]
    %v88 = vld [vmem:[#allocation2 + $0x74] sm:$0xff]
    %v89 = vld [vmem:[#allocation2 + $0x8c] sm:$0xff]
    %v90 = vld [vmem:[#allocation2 + $0x94] sm:$0xff]
    %v91 = vld [vmem:[#allocation2 + $0xac] sm:$0xff]
    %v92 = vld [vmem:[#allocation2 + $0xb4] sm:$0xff]
    %v93 = vld [vmem:[#allocation2 + $0xcc] sm:$0xff]
    %v94 = vld [vmem:[#allocation2 + $0xd4] sm:$0xff]
    %v95 = vld [vmem:[#allocation2 + $0xec] sm:$0xff]
    %v96 = vld [vmem:[#allocation2 + $0xf4] sm:$0xff]
    %v97 = vld [vmem:[#allocation2 + $0x10c] sm:$0xff]
    %v98 = vld [vmem:[#allocation2 + $0x114] sm:$0xff]
    %v99 = vld [vmem:[#allocation2 + $0x12c] sm:$0xff]
    %v100 = vld [vmem:[#allocation2 + $0x134] sm:$0xff]
    %v101 = vld [vmem:[#allocation2 + $0x14c] sm:$0xff]
    %v102 = vld [vmem:[#allocation2 + $0x154] sm:$0xff]
    %v103 = vld [vmem:[#allocation2 + $0x16c] sm:$0xff]
    %v104 = vld [vmem:[#allocation2 + $0x174] sm:$0xff]
    %v105 = vld [vmem:[#allocation2 + $0x18c] sm:$0xff]
    %v106 = vld [vmem:[#allocation2 + $0x194] sm:$0xff]
    %v107 = vld [vmem:[#allocation2 + $0x1ac] sm:$0xff]
    %v108 = vld [vmem:[#allocation2 + $0x1b4] sm:$0xff]
    %v109 = vld [vmem:[#allocation2 + $0x1cc] sm:$0xff]
    %v110 = vld [vmem:[#allocation2 + $0x1d4] sm:$0xff]
    %v111 = vld [vmem:[#allocation2 + $0x1ec] sm:$0xff]
    %v112 = vld [vmem:[#allocation2 + $0x1f4] sm:$0xff]
    %v113 = vld [vmem:[#allocation2 + $0x1c] sm:$0xf]
    %v114 = vld [vmem:[#allocation2 + $0x3c] sm:$0xf]
    %v115 = vld [vmem:[#allocation2 + $0x5c] sm:$0xf]
    %v116 = vld [vmem:[#allocation2 + $0x7c] sm:$0xf]
    %v117 = vld [vmem:[#allocation2 + $0x9c] sm:$0xf]
    %v118 = vld [vmem:[#allocation2 + $0xbc] sm:$0xf]
    %v119 = vld [vmem:[#allocation2 + $0xdc] sm:$0xf]
    %v120 = vld [vmem:[#allocation2 + $0xfc] sm:$0xf]
    %v121 = vld [vmem:[#allocation2 + $0x11c] sm:$0xf]
    %v122 = vld [vmem:[#allocation2 + $0x13c] sm:$0xf]
    %v123 = vld [vmem:[#allocation2 + $0x15c] sm:$0xf]
    %v124 = vld [vmem:[#allocation2 + $0x17c] sm:$0xf]
    %v125 = vld [vmem:[#allocation2 + $0x19c] sm:$0xf]
    %v126 = vld [vmem:[#allocation2 + $0x1bc] sm:$0xf]
    %v127 = vld [vmem:[#allocation2 + $0x1dc] sm:$0xf]
    %v128 = vld [vmem:[#allocation2 + $0x1fc] sm:$0xf]
    %v129 = vld [vmem:[%s3] sm:$0x3]
    %v130 = vld [vmem:[%s3 + $0x2] sm:$0x1]
    %v131 = vld [vmem:[%s3 + $0x3] sm:$0xf]
    %v132 = vld [vmem:[%s3 + $0x7] sm:$0x1]
    %v133 = vld [vmem:[%s3 + $0x8] sm:$0x1]
    %v134 = vld [vmem:[%s0] sm:$0xf]
    %v135 = vld [vmem:[%s0 + $0x4] sm:$0xf]
    %v137 = vperm.slane %v129, 0
    %v138 = vperm.slane %v129, 1
    %v143 = vunpack.c.l.b16 %v134
    %v144 = vunpack.c.l.b16 %v135
    %v145 = vpack.c.b16 %v144, %v143
    %v163 = vunpack.c.l.b16 %v49
    %v164 = vunpack.c.h.b16 %v49
    %v165 = vunpack.c.l.b16 %v50
    %v166 = vunpack.c.h.b16 %v50
    %v167 = vunpack.c.l.b16 %v51
    %v168 = vunpack.c.h.b16 %v51
    %v169 = vunpack.c.l.b16 %v52
    %v170 = vunpack.c.h.b16 %v52
    %v171 = vunpack.c.l.b16 %v53
    %v172 = vunpack.c.h.b16 %v53
    %v173 = vunpack.c.l.b16 %v54
    %v174 = vunpack.c.h.b16 %v54
    %v175 = vunpack.c.l.b16 %v55
    %v176 = vunpack.c.h.b16 %v55
    %v177 = vunpack.c.l.b16 %v56
    %v178 = vunpack.c.h.b16 %v56
    %v179 = vunpack.c.l.b16 %v57
    %v180 = vunpack.c.h.b16 %v57
    %v181 = vunpack.c.l.b16 %v58
    %v182 = vunpack.c.h.b16 %v58
    %v183 = vunpack.c.l.b16 %v59
    %v184 = vunpack.c.h.b16 %v59
    %v185 = vunpack.c.l.b16 %v60
    %v186 = vunpack.c.h.b16 %v60
    %v187 = vunpack.c.l.b16 %v61
    %v188 = vunpack.c.h.b16 %v61
    %v189 = vunpack.c.l.b16 %v62
    %v190 = vunpack.c.h.b16 %v62
    %v191 = vunpack.c.l.b16 %v63
    %v192 = vunpack.c.h.b16 %v63
    %v193 = vunpack.c.l.b16 %v64
    %v194 = vunpack.c.h.b16 %v64
    %v195 = vpack.c.b16 %v165, %v163
    %v196 = vpack.c.b16 %v166, %v164
    %v197 = vpack.c.b16 %v169, %v167
    %v198 = vpack.c.b16 %v170, %v168
    %v199 = vpack.c.b16 %v173, %v171
    %v200 = vpack.c.b16 %v174, %v172
    %v201 = vpack.c.b16 %v177, %v175
    %v202 = vpack.c.b16 %v178, %v176
    %v203 = vpack.c.b16 %v181, %v179
    %v204 = vpack.c.b16 %v182, %v180
    %v205 = vpack.c.b16 %v185, %v183
    %v206 = vpack.c.b16 %v186, %v184
    %v207 = vpack.c.b16 %v189, %v187
    %v208 = vpack.c.b16 %v190, %v188
    %v209 = vpack.c.b16 %v193, %v191
    %v210 = vpack.c.b16 %v194, %v192
    %227 = vmatpush.bf16.msra.mxu0 %v209
    %228 = vmatpush.bf16.msra.mxu0 %v207
    %229 = vmatpush.bf16.msra.mxu0 %v205
    %230 = vmatpush.bf16.msra.mxu0 %v203
    %231 = vmatpush.bf16.msra.mxu0 %v201
    %232 = vmatpush.bf16.msra.mxu0 %v199
    %233 = vmatpush.bf16.msra.mxu0 %v197
    %234 = vmatpush.bf16.msra.mxu0 %v195
    %235 = vmatmul.bf16.gmra.mxu0 %v145
    %v236 = vpop.f32.mrf.mxu0
    %v237 = vadd.f32 %v137, %v236
    %v238 = vpop.f32.mrf.mxu0
    %v239 = vadd.f32 %v137, %v238
    %240 = vdwg.mxu0
    %241 = vmatpush.bf16.msra.mxu0 %v210
    %242 = vmatpush.bf16.msra.mxu0 %v208
    %243 = vmatpush.bf16.msra.mxu0 %v206
    %244 = vmatpush.bf16.msra.mxu0 %v204
    %245 = vmatpush.bf16.msra.mxu0 %v202
    %246 = vmatpush.bf16.msra.mxu0 %v200
    %247 = vmatpush.bf16.msra.mxu0 %v198
    %248 = vmatpush.bf16.msra.mxu0 %v196
    %249 = vmatmul.bf16.gmra.mxu0 %v145
    %v250 = vpop.f32.mrf.mxu0
    %v251 = vadd.f32 %v138, %v250
    %v252 = vpop.f32.mrf.mxu0
    %v253 = vadd.f32 %v138, %v252
    %254 = vdwg.mxu0
    %v255 = vmax.f32 %v237, 0.0
    %v256 = vmax.f32 %v251, 0.0
    %v257 = vmax.f32 %v239, 0.0
    %v258 = vmax.f32 %v253, 0.0
    %v259 = vmax.f32 %v255, %v256
    %v260 = vmax.f32 %v257, %v258
    %v261 = vpack.c.bf16 %v260, %v259
    %v263 = vperm.slane %v130, 0
    %v281 = vunpack.c.l.b16 %v65
    %v282 = vunpack.c.l.b16 %v66
    %v283 = vunpack.c.l.b16 %v67
    %v284 = vunpack.c.l.b16 %v68
    %v285 = vunpack.c.l.b16 %v69
    %v286 = vunpack.c.l.b16 %v70
    %v287 = vunpack.c.l.b16 %v71
    %v288 = vunpack.c.l.b16 %v72
    %v289 = vunpack.c.l.b16 %v73
    %v290 = vunpack.c.l.b16 %v74
    %v291 = vunpack.c.l.b16 %v75
    %v292 = vunpack.c.l.b16 %v76
    %v293 = vunpack.c.l.b16 %v77
    %v294 = vunpack.c.l.b16 %v78
    %v295 = vunpack.c.l.b16 %v79
    %v296 = vunpack.c.l.b16 %v80
    %v297 = vpack.c.b16 %v282, %v281
    %v298 = vpack.c.b16 %v284, %v283
    %v299 = vpack.c.b16 %v286, %v285
    %v300 = vpack.c.b16 %v288, %v287
    %v301 = vpack.c.b16 %v290, %v289
    %v302 = vpack.c.b16 %v292, %v291
    %v303 = vpack.c.b16 %v294, %v293
    %v304 = vpack.c.b16 %v296, %v295
    %313 = vmatpush.bf16.msra.mxu0 %v304
    %314 = vmatpush.bf16.msra.mxu0 %v303
    %315 = vmatpush.bf16.msra.mxu0 %v302
    %316 = vmatpush.bf16.msra.mxu0 %v301
    %317 = vmatpush.bf16.msra.mxu0 %v300
    %318 = vmatpush.bf16.msra.mxu0 %v299
    %319 = vmatpush.bf16.msra.mxu0 %v298
    %320 = vmatpush.bf16.msra.mxu0 %v297
    %321 = vmatmul.bf16.gmra.mxu0 %v261
    %v322 = vpop.f32.mrf.mxu0
    %v323 = vadd.f32 %v263, %v322
    %v324 = vpop.f32.mrf.mxu0
    %v325 = vadd.f32 %v263, %v324
    %326 = vdwg.mxu0
    %v327 = vmax.f32 %v323, 0.0
    %v328 = vmax.f32 %v325, 0.0
    %v329 = vpack.c.bf16 %v328, %v327
    %v331 = vperm.slane %v131, 0
    %v332 = vperm.slane %v131, 1
    %v333 = vperm.slane %v131, 2
    %v334 = vperm.slane %v131, 3
    %v371 = vunpack.c.l.b16 %v81
    %v372 = vunpack.c.h.b16 %v81
    %v373 = vunpack.c.l.b16 %v82
    %v374 = vunpack.c.h.b16 %v82
    %v375 = vunpack.c.l.b16 %v83
    %v376 = vunpack.c.h.b16 %v83
    %v377 = vunpack.c.l.b16 %v84
    %v378 = vunpack.c.h.b16 %v84
    %v379 = vunpack.c.l.b16 %v85
    %v380 = vunpack.c.h.b16 %v85
    %v381 = vunpack.c.l.b16 %v86
    %v382 = vunpack.c.h.b16 %v86
    %v383 = vunpack.c.l.b16 %v87
    %v384 = vunpack.c.h.b16 %v87
    %v385 = vunpack.c.l.b16 %v88
    %v386 = vunpack.c.h.b16 %v88
    %v387 = vunpack.c.l.b16 %v89
    %v388 = vunpack.c.h.b16 %v89
    %v389 = vunpack.c.l.b16 %v90
    %v390 = vunpack.c.h.b16 %v90
    %v391 = vunpack.c.l.b16 %v91
    %v392 = vunpack.c.h.b16 %v91
    %v393 = vunpack.c.l.b16 %v92
    %v394 = vunpack.c.h.b16 %v92
    %v395 = vunpack.c.l.b16 %v93
    %v396 = vunpack.c.h.b16 %v93
    %v397 = vunpack.c.l.b16 %v94
    %v398 = vunpack.c.h.b16 %v94
    %v399 = vunpack.c.l.b16 %v95
    %v400 = vunpack.c.h.b16 %v95
    %v401 = vunpack.c.l.b16 %v96
    %v402 = vunpack.c.h.b16 %v96
    %v403 = vunpack.c.l.b16 %v97
    %v404 = vunpack.c.h.b16 %v97
    %v405 = vunpack.c.l.b16 %v98
    %v406 = vunpack.c.h.b16 %v98
    %v407 = vunpack.c.l.b16 %v99
    %v408 = vunpack.c.h.b16 %v99
    %v409 = vunpack.c.l.b16 %v100
    %v410 = vunpack.c.h.b16 %v100
    %v411 = vunpack.c.l.b16 %v101
    %v412 = vunpack.c.h.b16 %v101
    %v413 = vunpack.c.l.b16 %v102
    %v414 = vunpack.c.h.b16 %v102
    %v415 = vunpack.c.l.b16 %v103
    %v416 = vunpack.c.h.b16 %v103
    %v417 = vunpack.c.l.b16 %v104
    %v418 = vunpack.c.h.b16 %v104
    %v419 = vunpack.c.l.b16 %v105
    %v420 = vunpack.c.h.b16 %v105
    %v421 = vunpack.c.l.b16 %v106
    %v422 = vunpack.c.h.b16 %v106
    %v423 = vunpack.c.l.b16 %v107
    %v424 = vunpack.c.h.b16 %v107
    %v425 = vunpack.c.l.b16 %v108
    %v426 = vunpack.c.h.b16 %v108
    %v427 = vunpack.c.l.b16 %v109
    %v428 = vunpack.c.h.b16 %v109
    %v429 = vunpack.c.l.b16 %v110
    %v430 = vunpack.c.h.b16 %v110
    %v431 = vunpack.c.l.b16 %v111
    %v432 = vunpack.c.h.b16 %v111
    %v433 = vunpack.c.l.b16 %v112
    %v434 = vunpack.c.h.b16 %v112
    %v435 = vpack.c.b16 %v375, %v371
    %v436 = vpack.c.b16 %v376, %v372
    %v437 = vpack.c.b16 %v377, %v373
    %v438 = vpack.c.b16 %v378, %v374
    %v439 = vpack.c.b16 %v383, %v379
    %v440 = vpack.c.b16 %v384, %v380
    %v441 = vpack.c.b16 %v385, %v381
    %v442 = vpack.c.b16 %v386, %v382
    %v443 = vpack.c.b16 %v391, %v387
    %v444 = vpack.c.b16 %v392, %v388
    %v445 = vpack.c.b16 %v393, %v389
    %v446 = vpack.c.b16 %v394, %v390
    %v447 = vpack.c.b16 %v399, %v395
    %v448 = vpack.c.b16 %v400, %v396
    %v449 = vpack.c.b16 %v401, %v397
    %v450 = vpack.c.b16 %v402, %v398
    %v451 = vpack.c.b16 %v407, %v403
    %v452 = vpack.c.b16 %v408, %v404
    %v453 = vpack.c.b16 %v409, %v405
    %v454 = vpack.c.b16 %v410, %v406
    %v455 = vpack.c.b16 %v415, %v411
    %v456 = vpack.c.b16 %v416, %v412
    %v457 = vpack.c.b16 %v417, %v413
    %v458 = vpack.c.b16 %v418, %v414
    %v459 = vpack.c.b16 %v423, %v419
    %v460 = vpack.c.b16 %v424, %v420
    %v461 = vpack.c.b16 %v425, %v421
    %v462 = vpack.c.b16 %v426, %v422
    %v463 = vpack.c.b16 %v431, %v427
    %v464 = vpack.c.b16 %v432, %v428
    %v465 = vpack.c.b16 %v433, %v429
    %v466 = vpack.c.b16 %v434, %v430
    %499 = vmatpush.bf16.msra.mxu0 %v463
    %500 = vmatpush.bf16.msra.mxu0 %v459
    %501 = vmatpush.bf16.msra.mxu0 %v455
    %502 = vmatpush.bf16.msra.mxu0 %v451
    %503 = vmatpush.bf16.msra.mxu0 %v447
    %504 = vmatpush.bf16.msra.mxu0 %v443
    %505 = vmatpush.bf16.msra.mxu0 %v439
    %506 = vmatpush.bf16.msra.mxu0 %v435
    %507 = vmatmul.bf16.gmra.mxu0 %v329
    %v508 = vpop.f32.mrf.mxu0
    %v509 = vadd.f32 %v331, %v508
    %v510 = vpop.f32.mrf.mxu0
    %v511 = vadd.f32 %v331, %v510
    %512 = vdwg.mxu0
    %513 = vmatpush.bf16.msra.mxu0 %v464
    %514 = vmatpush.bf16.msra.mxu0 %v460
    %515 = vmatpush.bf16.msra.mxu0 %v456
    %516 = vmatpush.bf16.msra.mxu0 %v452
    %517 = vmatpush.bf16.msra.mxu0 %v448
    %518 = vmatpush.bf16.msra.mxu0 %v444
    %519 = vmatpush.bf16.msra.mxu0 %v440
    %520 = vmatpush.bf16.msra.mxu0 %v436
    %521 = vmatmul.bf16.gmra.mxu0 %v329
    %v522 = vpop.f32.mrf.mxu0
    %v523 = vadd.f32 %v332, %v522
    %v524 = vpop.f32.mrf.mxu0
    %v525 = vadd.f32 %v332, %v524
    %526 = vdwg.mxu0
    %527 = vmatpush.bf16.msra.mxu0 %v465
    %528 = vmatpush.bf16.msra.mxu0 %v461
    %529 = vmatpush.bf16.msra.mxu0 %v457
    %530 = vmatpush.bf16.msra.mxu0 %v453
    %531 = vmatpush.bf16.msra.mxu0 %v449
    %532 = vmatpush.bf16.msra.mxu0 %v445
    %533 = vmatpush.bf16.msra.mxu0 %v441
    %534 = vmatpush.bf16.msra.mxu0 %v437
    %535 = vmatmul.bf16.gmra.mxu0 %v329
    %v536 = vpop.f32.mrf.mxu0
    %v537 = vadd.f32 %v333, %v536
    %v538 = vpop.f32.mrf.mxu0
    %v539 = vadd.f32 %v333, %v538
    %540 = vdwg.mxu0
    %541 = vmatpush.bf16.msra.mxu0 %v466
    %542 = vmatpush.bf16.msra.mxu0 %v462
    %543 = vmatpush.bf16.msra.mxu0 %v458
    %544 = vmatpush.bf16.msra.mxu0 %v454
    %545 = vmatpush.bf16.msra.mxu0 %v450
    %546 = vmatpush.bf16.msra.mxu0 %v446
    %547 = vmatpush.bf16.msra.mxu0 %v442
    %548 = vmatpush.bf16.msra.mxu0 %v438
    %549 = vmatmul.bf16.gmra.mxu0 %v329
    %v550 = vpop.f32.mrf.mxu0
    %v551 = vadd.f32 %v334, %v550
    %v552 = vpop.f32.mrf.mxu0
    %v553 = vadd.f32 %v334, %v552
    %554 = vdwg.mxu0
    %v555 = vmax.f32 %v509, 0.0
    %v556 = vmax.f32 %v523, 0.0
    %v557 = vmax.f32 %v537, 0.0
    %v558 = vmax.f32 %v551, 0.0
    %v559 = vmax.f32 %v511, 0.0
    %v560 = vmax.f32 %v525, 0.0
    %v561 = vmax.f32 %v539, 0.0
    %v562 = vmax.f32 %v553, 0.0
    %v563 = vpack.c.bf16 %v559, %v555
    %v564 = vpack.c.bf16 %v560, %v556
    %v565 = vpack.c.bf16 %v561, %v557
    %v566 = vpack.c.bf16 %v562, %v558
    %v567 = vld [vmem:[#allocation4] sm:$0xf]
    %v568 = vld [vmem:[#allocation4 + $0x4] sm:$0xf]
    %v569 = vld [vmem:[#allocation4 + $0x8] sm:$0xf]
    %v570 = vld [vmem:[#allocation4 + $0xc] sm:$0xf]
    %v571 = vld [vmem:[#allocation4 + $0x10] sm:$0xf]
    %v572 = vld [vmem:[#allocation4 + $0x14] sm:$0xf]
    %v573 = vld [vmem:[#allocation4 + $0x18] sm:$0xf]
    %v574 = vld [vmem:[#allocation4 + $0x1c] sm:$0xf]
    %v575 = vld [vmem:[#allocation4 + $0x20] sm:$0xf]
    %v576 = vld [vmem:[#allocation4 + $0x24] sm:$0xf]
    %v577 = vld [vmem:[#allocation4 + $0x28] sm:$0xf]
    %v578 = vld [vmem:[#allocation4 + $0x2c] sm:$0xf]
    %v579 = vld [vmem:[#allocation4 + $0x30] sm:$0xf]
    %v580 = vld [vmem:[#allocation4 + $0x34] sm:$0xf]
    %v581 = vld [vmem:[#allocation4 + $0x38] sm:$0xf]
    %v582 = vld [vmem:[#allocation4 + $0x3c] sm:$0xf]
    %v583 = vld [vmem:[#allocation4 + $0x40] sm:$0xf]
    %v584 = vld [vmem:[#allocation4 + $0x44] sm:$0xf]
    %v585 = vld [vmem:[#allocation4 + $0x48] sm:$0xf]
    %v586 = vld [vmem:[#allocation4 + $0x4c] sm:$0xf]
    %v587 = vld [vmem:[#allocation4 + $0x50] sm:$0xf]
    %v588 = vld [vmem:[#allocation4 + $0x54] sm:$0xf]
    %v589 = vld [vmem:[#allocation4 + $0x58] sm:$0xf]
    %v590 = vld [vmem:[#allocation4 + $0x5c] sm:$0xf]
    %v591 = vld [vmem:[#allocation4 + $0x60] sm:$0xf]
    %v592 = vld [vmem:[#allocation4 + $0x64] sm:$0xf]
    %v593 = vld [vmem:[#allocation4 + $0x68] sm:$0xf]
    %v594 = vld [vmem:[#allocation4 + $0x6c] sm:$0xf]
    %v595 = vld [vmem:[#allocation4 + $0x70] sm:$0xf]
    %v596 = vld [vmem:[#allocation4 + $0x74] sm:$0xf]
    %v597 = vld [vmem:[#allocation4 + $0x78] sm:$0xf]
    %v598 = vld [vmem:[#allocation4 + $0x7c] sm:$0xf]
    %v599 = vld [vmem:[#allocation4 + $0x80] sm:$0xf]
    %v600 = vld [vmem:[#allocation4 + $0x84] sm:$0xf]
    %v601 = vld [vmem:[#allocation4 + $0x88] sm:$0xf]
    %v602 = vld [vmem:[#allocation4 + $0x8c] sm:$0xf]
    %v603 = vld [vmem:[#allocation4 + $0x90] sm:$0xf]
    %v604 = vld [vmem:[#allocation4 + $0x94] sm:$0xf]
    %v605 = vld [vmem:[#allocation4 + $0x98] sm:$0xf]
    %v606 = vld [vmem:[#allocation4 + $0x9c] sm:$0xf]
    %v607 = vld [vmem:[#allocation4 + $0xa0] sm:$0xf]
    %v608 = vld [vmem:[#allocation4 + $0xa4] sm:$0xf]
    %v609 = vld [vmem:[#allocation4 + $0xa8] sm:$0xf]
    %v610 = vld [vmem:[#allocation4 + $0xac] sm:$0xf]
    %v611 = vld [vmem:[#allocation4 + $0xb0] sm:$0xf]
    %v612 = vld [vmem:[#allocation4 + $0xb4] sm:$0xf]
    %v613 = vld [vmem:[#allocation4 + $0xb8] sm:$0xf]
    %v614 = vld [vmem:[#allocation4 + $0xbc] sm:$0xf]
    %v615 = vld [vmem:[#allocation4 + $0xc0] sm:$0xf]
    %v616 = vld [vmem:[#allocation4 + $0xc4] sm:$0xf]
    %v617 = vld [vmem:[#allocation4 + $0xc8] sm:$0xf]
    %v618 = vld [vmem:[#allocation4 + $0xcc] sm:$0xf]
    %v619 = vld [vmem:[#allocation4 + $0xd0] sm:$0xf]
    %v620 = vld [vmem:[#allocation4 + $0xd4] sm:$0xf]
    %v621 = vld [vmem:[#allocation4 + $0xd8] sm:$0xf]
    %v622 = vld [vmem:[#allocation4 + $0xdc] sm:$0xf]
    %v623 = vld [vmem:[#allocation4 + $0xe0] sm:$0xf]
    %v624 = vld [vmem:[#allocation4 + $0xe4] sm:$0xf]
    %v625 = vld [vmem:[#allocation4 + $0xe8] sm:$0xf]
    %v626 = vld [vmem:[#allocation4 + $0xec] sm:$0xf]
    %v627 = vld [vmem:[#allocation4 + $0xf0] sm:$0xf]
    %v628 = vld [vmem:[#allocation4 + $0xf4] sm:$0xf]
    %v629 = vld [vmem:[#allocation4 + $0xf8] sm:$0xf]
    %v630 = vld [vmem:[#allocation4 + $0xfc] sm:$0xf]
    %v632 = vperm.slane %v132, 0
    %v698 = vunpack.c.l.b16 %v567
    %v699 = vunpack.c.l.b16 %v568
    %v700 = vunpack.c.l.b16 %v569
    %v701 = vunpack.c.l.b16 %v570
    %v702 = vunpack.c.l.b16 %v571
    %v703 = vunpack.c.l.b16 %v572
    %v704 = vunpack.c.l.b16 %v573
    %v705 = vunpack.c.l.b16 %v574
    %v706 = vunpack.c.l.b16 %v575
    %v707 = vunpack.c.l.b16 %v576
    %v708 = vunpack.c.l.b16 %v577
    %v709 = vunpack.c.l.b16 %v578
    %v710 = vunpack.c.l.b16 %v579
    %v711 = vunpack.c.l.b16 %v580
    %v712 = vunpack.c.l.b16 %v581
    %v713 = vunpack.c.l.b16 %v582
    %v714 = vunpack.c.l.b16 %v583
    %v715 = vunpack.c.l.b16 %v584
    %v716 = vunpack.c.l.b16 %v585
    %v717 = vunpack.c.l.b16 %v586
    %v718 = vunpack.c.l.b16 %v587
    %v719 = vunpack.c.l.b16 %v588
    %v720 = vunpack.c.l.b16 %v589
    %v721 = vunpack.c.l.b16 %v590
    %v722 = vunpack.c.l.b16 %v591
    %v723 = vunpack.c.l.b16 %v592
    %v724 = vunpack.c.l.b16 %v593
    %v725 = vunpack.c.l.b16 %v594
    %v726 = vunpack.c.l.b16 %v595
    %v727 = vunpack.c.l.b16 %v596
    %v728 = vunpack.c.l.b16 %v597
    %v729 = vunpack.c.l.b16 %v598
    %v730 = vunpack.c.l.b16 %v599
    %v731 = vunpack.c.l.b16 %v600
    %v732 = vunpack.c.l.b16 %v601
    %v733 = vunpack.c.l.b16 %v602
    %v734 = vunpack.c.l.b16 %v603
    %v735 = vunpack.c.l.b16 %v604
    %v736 = vunpack.c.l.b16 %v605
    %v737 = vunpack.c.l.b16 %v606
    %v738 = vunpack.c.l.b16 %v607
    %v739 = vunpack.c.l.b16 %v608
    %v740 = vunpack.c.l.b16 %v609
    %v741 = vunpack.c.l.b16 %v610
    %v742 = vunpack.c.l.b16 %v611
    %v743 = vunpack.c.l.b16 %v612
    %v744 = vunpack.c.l.b16 %v613
    %v745 = vunpack.c.l.b16 %v614
    %v746 = vunpack.c.l.b16 %v615
    %v747 = vunpack.c.l.b16 %v616
    %v748 = vunpack.c.l.b16 %v617
    %v749 = vunpack.c.l.b16 %v618
    %v750 = vunpack.c.l.b16 %v619
    %v751 = vunpack.c.l.b16 %v620
    %v752 = vunpack.c.l.b16 %v621
    %v753 = vunpack.c.l.b16 %v622
    %v754 = vunpack.c.l.b16 %v623
    %v755 = vunpack.c.l.b16 %v624
    %v756 = vunpack.c.l.b16 %v625
    %v757 = vunpack.c.l.b16 %v626
    %v758 = vunpack.c.l.b16 %v627
    %v759 = vunpack.c.l.b16 %v628
    %v760 = vunpack.c.l.b16 %v629
    %v761 = vunpack.c.l.b16 %v630
    %v762 = vpack.c.b16 %v699, %v698
    %v763 = vpack.c.b16 %v701, %v700
    %v764 = vpack.c.b16 %v703, %v702
    %v765 = vpack.c.b16 %v705, %v704
    %v766 = vpack.c.b16 %v707, %v706
    %v767 = vpack.c.b16 %v709, %v708
    %v768 = vpack.c.b16 %v711, %v710
    %v769 = vpack.c.b16 %v713, %v712
    %v770 = vpack.c.b16 %v715, %v714
    %v771 = vpack.c.b16 %v717, %v716
    %v772 = vpack.c.b16 %v719, %v718
    %v773 = vpack.c.b16 %v721, %v720
    %v774 = vpack.c.b16 %v723, %v722
    %v775 = vpack.c.b16 %v725, %v724
    %v776 = vpack.c.b16 %v727, %v726
    %v777 = vpack.c.b16 %v729, %v728
    %v778 = vpack.c.b16 %v731, %v730
    %v779 = vpack.c.b16 %v733, %v732
    %v780 = vpack.c.b16 %v735, %v734
    %v781 = vpack.c.b16 %v737, %v736
    %v782 = vpack.c.b16 %v739, %v738
    %v783 = vpack.c.b16 %v741, %v740
    %v784 = vpack.c.b16 %v743, %v742
    %v785 = vpack.c.b16 %v745, %v744
    %v786 = vpack.c.b16 %v747, %v746
    %v787 = vpack.c.b16 %v749, %v748
    %v788 = vpack.c.b16 %v751, %v750
    %v789 = vpack.c.b16 %v753, %v752
    %v790 = vpack.c.b16 %v755, %v754
    %v791 = vpack.c.b16 %v757, %v756
    %v792 = vpack.c.b16 %v759, %v758
    %v793 = vpack.c.b16 %v761, %v760
    %826 = vmatpush.bf16.msra.mxu0 %v769
    %827 = vmatpush.bf16.msra.mxu0 %v768
    %828 = vmatpush.bf16.msra.mxu0 %v767
    %829 = vmatpush.bf16.msra.mxu0 %v766
    %830 = vmatpush.bf16.msra.mxu0 %v765
    %831 = vmatpush.bf16.msra.mxu0 %v764
    %832 = vmatpush.bf16.msra.mxu0 %v763
    %833 = vmatpush.bf16.msra.mxu0 %v762
    %834 = vmatmul.bf16.gmra.mxu0 %v563
    %v835 = vpop.f32.mrf.mxu0
    %v836 = vadd.f32 %v632, %v835
    %v837 = vpop.f32.mrf.mxu0
    %v838 = vadd.f32 %v632, %v837
    %839 = vdwg.mxu0
    %840 = vmatpush.bf16.msra.mxu0 %v777
    %841 = vmatpush.bf16.msra.mxu0 %v776
    %842 = vmatpush.bf16.msra.mxu0 %v775
    %843 = vmatpush.bf16.msra.mxu0 %v774
    %844 = vmatpush.bf16.msra.mxu0 %v773
    %845 = vmatpush.bf16.msra.mxu0 %v772
    %846 = vmatpush.bf16.msra.mxu0 %v771
    %847 = vmatpush.bf16.msra.mxu0 %v770
    %848 = vmatmul.bf16.gmra.mxu0 %v564
    %v849 = vpop.f32.mrf.mxu0
    %v850 = vadd.f32 %v836, %v849
    %v851 = vpop.f32.mrf.mxu0
    %v852 = vadd.f32 %v838, %v851
    %853 = vdwg.mxu0
    %854 = vmatpush.bf16.msra.mxu0 %v785
    %855 = vmatpush.bf16.msra.mxu0 %v784
    %856 = vmatpush.bf16.msra.mxu0 %v783
    %857 = vmatpush.bf16.msra.mxu0 %v782
    %858 = vmatpush.bf16.msra.mxu0 %v781
    %859 = vmatpush.bf16.msra.mxu0 %v780
    %860 = vmatpush.bf16.msra.mxu0 %v779
    %861 = vmatpush.bf16.msra.mxu0 %v778
    %862 = vmatmul.bf16.gmra.mxu0 %v565
    %v863 = vpop.f32.mrf.mxu0
    %v864 = vadd.f32 %v850, %v863
    %v865 = vpop.f32.mrf.mxu0
    %v866 = vadd.f32 %v852, %v865
    %867 = vdwg.mxu0
    %868 = vmatpush.bf16.msra.mxu0 %v793
    %869 = vmatpush.bf16.msra.mxu0 %v792
    %870 = vmatpush.bf16.msra.mxu0 %v791
    %871 = vmatpush.bf16.msra.mxu0 %v790
    %872 = vmatpush.bf16.msra.mxu0 %v789
    %873 = vmatpush.bf16.msra.mxu0 %v788
    %874 = vmatpush.bf16.msra.mxu0 %v787
    %875 = vmatpush.bf16.msra.mxu0 %v786
    %876 = vmatmul.bf16.gmra.mxu0 %v566
    %v877 = vpop.f32.mrf.mxu0
    %v878 = vadd.f32 %v864, %v877
    %v879 = vpop.f32.mrf.mxu0
    %v880 = vadd.f32 %v866, %v879
    %881 = vdwg.mxu0
    %v882 = vmax.f32 %v878, 0.0
    %v883 = vmax.f32 %v880, 0.0
    %v884 = vpack.c.bf16 %v883, %v882
    %v886 = vperm.slane %v133, 0
    %v904 = vunpack.c.l.b16 %v113
    %v905 = vunpack.c.l.b16 %v114
    %v906 = vunpack.c.l.b16 %v115
    %v907 = vunpack.c.l.b16 %v116
    %v908 = vunpack.c.l.b16 %v117
    %v909 = vunpack.c.l.b16 %v118
    %v910 = vunpack.c.l.b16 %v119
    %v911 = vunpack.c.l.b16 %v120
    %v912 = vunpack.c.l.b16 %v121
    %v913 = vunpack.c.l.b16 %v122
    %v914 = vunpack.c.l.b16 %v123
    %v915 = vunpack.c.l.b16 %v124
    %v916 = vunpack.c.l.b16 %v125
    %v917 = vunpack.c.l.b16 %v126
    %v918 = vunpack.c.l.b16 %v127
    %v919 = vunpack.c.l.b16 %v128
    %v920 = vpack.c.b16 %v905, %v904
    %v921 = vpack.c.b16 %v907, %v906
    %v922 = vpack.c.b16 %v909, %v908
    %v923 = vpack.c.b16 %v911, %v910
    %v924 = vpack.c.b16 %v913, %v912
    %v925 = vpack.c.b16 %v915, %v914
    %v926 = vpack.c.b16 %v917, %v916
    %v927 = vpack.c.b16 %v919, %v918
    %936 = vmatpush.bf16.msra.mxu0 %v927
    %937 = vmatpush.bf16.msra.mxu0 %v926
    %938 = vmatpush.bf16.msra.mxu0 %v925
    %939 = vmatpush.bf16.msra.mxu0 %v924
    %940 = vmatpush.bf16.msra.mxu0 %v923
    %941 = vmatpush.bf16.msra.mxu0 %v922
    %942 = vmatpush.bf16.msra.mxu0 %v921
    %943 = vmatpush.bf16.msra.mxu0 %v920
    %944 = vmatmul.bf16.gmra.mxu0 %v884
    %v945 = vpop.f32.mrf.mxu0
    %v946 = vadd.f32 %v886, %v945
    %v947 = vpop.f32.mrf.mxu0
    %v948 = vadd.f32 %v886, %v947
    %949 = vdwg.mxu0
    %950 = vst [vmem:[%s4] sm:$0xff] %v946
    %951 = vst [vmem:[%s4 + $0x8] sm:$0xff] %v948
    // Predicated region
    $region26: #{fused_forward.1} parent=1 // pred_check
      _
    $region27: #{fused_forward.1} parent=1 // pred_check_branch
      %953 = sbr.rel (0) target = $region29
    $region28: #{fused_forward.1} parent=1 // pred_region
      _
    $region29: #{fused_forward.1} parent=1 // pred_fallthru
      _
    // Predicated region
    $region30: #{fused_forward.1} parent=1 // pred_check
      _
    $region31: #{fused_forward.1} parent=1 // pred_check_branch
      %955 = sbr.rel (0) target = $region33
    $region32: #{fused_forward.1} parent=1 // pred_region
      _
    $region33: #{fused_forward.1} parent=1 // pred_fallthru
      _
    %956 = vsyncpa [#allocation3], 1
    %957 = vsyncpa [#allocation5], 1

</llo_original>
